<compile_context>
chip_gen: v5e
topology: v5e:2x2
jax: 0.10.0
libtpu: 0.0.40
codegen_flags: <defaults>
</compile_context>

<pallas_src>
import functools

import numpy as np
import jax
import jax.numpy as jnp
from jax import lax
from jax.experimental import pallas as pl
from jax.experimental.pallas import tpu as pltpu

# Large finite negative (avoids -inf arithmetic edge cases; exp underflows to 0 exactly).
_MASK_VALUE = -0.7 * float(np.finfo(np.float32).max)


@functools.lru_cache(maxsize=1)
def _vmem_limit_bytes():
    """Per-generation scoped-VMEM limit (v5e/v6e: 128 MiB phys, v7x: 64 MiB)."""
    try:
        cap = int(pltpu.get_tpu_info().vmem_capacity_bytes)
        lim = min(int(cap * 3 // 4), cap - 16 * 1024 * 1024)
        return max(lim, 16 * 1024 * 1024)
    except Exception:
        return 32 * 1024 * 1024  # safe default on every current generation


def _pick_tile(dim, candidates):
    """Largest candidate tile that divides `dim`, else the full dimension."""
    for c in candidates:
        if c <= dim and dim % c == 0:
            return c
    return dim


def _pick_row_tile(m, k, itemsize, max_bytes=4 * 1024 * 1024):
    """Row tile for (tm, K) operand blocks, capped so a single block stays small in VMEM."""
    cands = [t for t in (2048, 1024, 512, 256, 128, 64, 32, 16, 8)
             if t * k * itemsize <= max_bytes]
    if not cands:
        cands = [8]
    for t in cands:
        if t <= m and m % t == 0:
            return t
    return m  # full (small) M fallback


def _head_group(nh, hs, target_width=512):
    """Largest divisor of nh whose combined column width g*hs stays MXU/lane friendly."""
    for cand in range(nh, 0, -1):
        if nh % cand == 0 and cand * hs <= max(target_width, hs):
            return cand
    return 1


# ---------------------------------------------------------------------------
# 1) QKV projection, written head-major:  out[c, h, m, :] = x[m] @ Wqkv[:, (c,h)] + b
#    x:(M,H)  w_r:(3, G, H, g*hs)  b_r:(3, G, 1, g*hs)  ->  (3, nh, M, hs)
# ---------------------------------------------------------------------------
def _qkv_proj_kernel(x_ref, w_ref, b_ref, o_ref, *, g, hs):
    # Full-width matmul on the MXU (g heads of one of Q/K/V per step), f32 accumulation.
    acc = jnp.dot(x_ref[...], w_ref[...], preferred_element_type=jnp.float32)
    acc = acc + b_ref[...].astype(jnp.float32)          # (tm, g*hs)
    out = acc.astype(o_ref.dtype)
    # Per-head lane slices stored head-major (XLU lane shuffles only, off the MXU slot).
    for gi in range(g):
        o_ref[gi] = out[:, gi * hs:(gi + 1) * hs]


def _qkv_proj(x2d, w_r, b_r, *, nh, hs, g, out_dtype):
    M, H = x2d.shape
    _, G, _, gw = w_r.shape                              # gw = g * hs
    tm = _pick_row_tile(M, H, jnp.dtype(x2d.dtype).itemsize)
    # TODO(synk): for very large hidden sizes (H >~ 4k) add a K grid axis + f32 accumulator
    # scratch instead of holding full (tm, H) / (H, g*hs) operand blocks.
    cost = pl.CostEstimate(
        flops=2 * M * H * 3 * H,
        transcendentals=0,
        bytes_accessed=(M * H + 3 * H * H) * jnp.dtype(x2d.dtype).itemsize
        + 3 * M * H * jnp.dtype(out_dtype).itemsize)
    kernel = functools.partial(_qkv_proj_kernel, g=g, hs=hs)
    return pl.pallas_call(
        kernel,
        out_shape=jax.ShapeDtypeStruct((3, nh, M, hs), out_dtype),
        grid_spec=pltpu.PrefetchScalarGridSpec(
            num_scalar_prefetch=0,
            # Column axes innermost: the x row block index is unchanged across them, so
            # Pallas skips its re-fetch and x is streamed from HBM exactly once.
            grid=(M // tm, 3, G),
            in_specs=[
                pl.BlockSpec((tm, H), lambda i, c, grp: (i, 0)),
                pl.BlockSpec((None, None, H, gw), lambda i, c, grp: (c, grp, 0, 0)),
                pl.BlockSpec((None, None, 1, gw), lambda i, c, grp: (c, grp, 0, 0)),
            ],
            out_specs=pl.BlockSpec((None, g, tm, hs), lambda i, c, grp: (c, grp, i, 0)),
        ),
        compiler_params=pltpu.CompilerParams(
            dimension_semantics=("parallel", "parallel", "parallel"),
            vmem_limit_bytes=_vmem_limit_bytes()),
        cost_estimate=cost,
    )(x2d, w_r, b_r)


# ---------------------------------------------------------------------------
# 2) Flash attention (causal, online softmax)
#    qkv : (3, nh, M=B*S, hs); Q already pre-scaled by 1/sqrt(hs).  -> (nh, M, hs)
# ---------------------------------------------------------------------------
def _flash_attn_kernel(q_ref, k_ref, v_ref, o_ref, m_ref, l_ref, acc_ref, *, tq, tk):
    qi = pl.program_id(2)
    ki = pl.program_id(3)

    @pl.when(ki == 0)
    def _init():
        m_ref[...] = jnp.full_like(m_ref, _MASK_VALUE)
        l_ref[...] = jnp.zeros_like(l_ref)
        acc_ref[...] = jnp.zeros_like(acc_ref)

    def _scores():
        # QK^T without an explicit transpose: contract the last dims on the MXU.
        return lax.dot_general(q_ref[...], k_ref[...], (((1,), (1,)), ((), ())),
                               preferred_element_type=jnp.float32)      # (tq, tk) f32

    def _update(s):
        m_prev = m_ref[...]                                             # (tq, 1)
        m_new = jnp.maximum(m_prev, jnp.max(s, axis=-1, keepdims=True))
        alpha = jnp.exp(m_prev - m_new)
        p = jnp.exp(s - m_new)                                          # (tq, tk) f32
        l_ref[...] = alpha * l_ref[...] + jnp.sum(p, axis=-1, keepdims=True)
        # Cast probabilities once, right before the PV matmul (native dtype on MXU).
        acc_ref[...] = alpha * acc_ref[...] + jnp.dot(
            p.astype(v_ref.dtype), v_ref[...], preferred_element_type=jnp.float32)
        m_ref[...] = m_new

    q_start = qi * tq
    k_start = ki * tk
    below_diag = (k_start + (tk - 1)) <= q_start            # fully unmasked kv block
    on_diag = jnp.logical_and(k_start <= q_start + (tq - 1),
                              jnp.logical_not(below_diag))  # intersects the diagonal
    # Fully masked blocks (k_start > q_start + tq - 1) do nothing: compute is skipped
    # here and their DMA was already skipped by the clamped kv index map.

    @pl.when(below_diag)
    def _full_block():
        _update(_scores())                                   # no mask ops at all

    @pl.when(on_diag)
    def _diag_block():
        s = _scores()
        q_pos = q_start + lax.broadcasted_iota(jnp.int32, (tq, tk), 0)
        k_pos = k_start + lax.broadcasted_iota(jnp.int32, (tq, tk), 1)
        _update(jnp.where(k_pos <= q_pos, s, _MASK_VALUE))

    @pl.when(ki == pl.num_programs(3) - 1)
    def _finalize():
        l = l_ref[...]
        inv_l = pl.reciprocal(l, approx=True)                # EUP slot (free vs. VALU)
        inv_l = inv_l * (2.0 - l * inv_l)                    # one Newton step -> ~f32 accuracy
        o_ref[...] = (acc_ref[...] * inv_l).astype(o_ref.dtype)


def _flash_attention(qkv, *, B, S, nh, hs):
    M = B * S
    tq = _pick_tile(S, (512, 256, 128, 64, 32, 16, 8))
    tk = _pick_tile(S, (1024, 512, 256, 128, 64, 32, 16, 8))   # deeper kv steps (v5e-friendly)
    nbq = S // tq
    nbk = S // tk
    kernel = functools.partial(_flash_attn_kernel, tq=tq, tk=tk)

    def q_index(b, h, qi, ki):
        return (0, h, b * nbq + qi, 0)

    def kv_index(component):
        def index(b, h, qi, ki):
            # Clamp to the last kv block containing any unmasked key for this q tile:
            # above-diagonal steps repeat the previous block index, so Pallas skips
            # their DMA entirely (compute is independently skipped in the kernel).
            last = (qi * tq + (tq - 1)) // tk
            return (component, h, b * nbk + jnp.minimum(ki, last), 0)
        return index

    def o_index(b, h, qi, ki):
        return (h, b * nbq + qi, 0)

    itemsize = jnp.dtype(qkv.dtype).itemsize
    cost = pl.CostEstimate(
        flops=2 * B * nh * S * S * hs,                  # 2 matmuls * causal half
        transcendentals=B * nh * S * S // 2,
        bytes_accessed=4 * M * nh * hs * itemsize)

    # TODO(synk): at head_size < 128 the (tq, hs) output stores are lane-masked; packing
    # two heads per grid step would make stores lane-dense and double MXU utilization.
    return pl.pallas_call(
        kernel,
        out_shape=jax.ShapeDtypeStruct((nh, M, hs), qkv.dtype),
        grid_spec=pltpu.PrefetchScalarGridSpec(
            num_scalar_prefetch=0,
            grid=(B, nh, nbq, nbk),                     # kv (reduction) axis last
            in_specs=[
                pl.BlockSpec((None, None, tq, hs), q_index),
                pl.BlockSpec((None, None, tk, hs), kv_index(1)),
                pl.BlockSpec((None, None, tk, hs), kv_index(2)),
            ],
            out_specs=pl.BlockSpec((None, tq, hs), o_index),
            scratch_shapes=[
                pltpu.VMEM((tq, 1), jnp.float32),       # running max m
                pltpu.VMEM((tq, 1), jnp.float32),       # running denom l
                pltpu.VMEM((tq, hs), jnp.float32),      # output accumulator
            ],
        ),
        compiler_params=pltpu.CompilerParams(
            dimension_semantics=("parallel", "parallel", "parallel", "arbitrary"),
            vmem_limit_bytes=_vmem_limit_bytes()),
        cost_estimate=cost,
    )(qkv, qkv, qkv)


# ---------------------------------------------------------------------------
# 3) Output projection consuming the head-major attention output directly:
#    out[m, :] = sum_h attn[h, m, :] @ Wo[h*hs:(h+1)*hs, :] + b_o
#    attn:(nh, M, hs)  wo_r:(nh, hs, H)  bo:(1, H)  ->  (M, H)
# ---------------------------------------------------------------------------
def _out_proj_kernel(a_ref, w_ref, b_ref, o_ref, acc_ref):
    h = pl.program_id(2)

    @pl.when(h == 0)
    def _init():
        acc_ref[...] = jnp.zeros_like(acc_ref)

    acc_ref[...] += jnp.dot(a_ref[...], w_ref[...], preferred_element_type=jnp.float32)

    @pl.when(h == pl.num_programs(2) - 1)
    def _store():
        o_ref[...] = (acc_ref[...] + b_ref[...].astype(jnp.float32)).astype(o_ref.dtype)


def _out_proj(attn, wo_r, bo, *, out_dtype):
    nh, M, hs = attn.shape
    _, _, H = wo_r.shape
    tm = _pick_tile(M, (1024, 512, 256, 128, 64, 32, 16, 8))
    tn = _pick_tile(H, (512, 256, 128))                  # lane-dense output tiles
    itemsize = jnp.dtype(attn.dtype).itemsize
    cost = pl.CostEstimate(
        flops=2 * M * H * H,
        transcendentals=0,
        bytes_accessed=(2 * M * H + H * H) * itemsize)
    return pl.pallas_call(
        _out_proj_kernel,
        out_shape=jax.ShapeDtypeStruct((M, H), out_dtype),
        grid_spec=pltpu.PrefetchScalarGridSpec(
            num_scalar_prefetch=0,
            grid=(M // tm, H // tn, nh),                 # head axis = reduction, last
            in_specs=[
                pl.BlockSpec((None, tm, hs), lambda i, j, h: (h, i, 0)),
                pl.BlockSpec((None, hs, tn), lambda i, j, h: (h, 0, j)),
                pl.BlockSpec((1, tn), lambda i, j, h: (0, j)),
            ],
            out_specs=pl.BlockSpec((tm, tn), lambda i, j, h: (i, j)),
            scratch_shapes=[pltpu.VMEM((tm, tn), jnp.float32)],
        ),
        compiler_params=pltpu.CompilerParams(
            dimension_semantics=("parallel", "parallel", "arbitrary"),
            vmem_limit_bytes=_vmem_limit_bytes()),
        cost_estimate=cost,
    )(attn, wo_r, bo)


# ---------------------------------------------------------------------------
# Full forward pass
# ---------------------------------------------------------------------------
def gpt_mha_pallas(x, wqkv, bqkv, wo, bo, num_heads):
    B, S, H = x.shape
    assert H % num_heads == 0, "hidden_size must be divisible by num_heads"
    nh = num_heads
    hs = H // nh
    assert S % 8 == 0, "sequence length must be a multiple of 8 (TPU sublane tiling)"
    M = B * S

    # Fold 1/sqrt(head_size) into the Q columns of W_qkv / b_qkv.  The scaling is done
    # in f32 before casting back, so low-precision weights pick up no extra rounding.
    scale = 1.0 / float(np.sqrt(hs))
    col_scale = jnp.concatenate([jnp.full((H,), scale, jnp.float32),
                                 jnp.ones((2 * H,), jnp.float32)])
    wqkv_s = (wqkv.astype(jnp.float32) * col_scale[None, :]).astype(wqkv.dtype)
    bqkv_s = (bqkv.astype(jnp.float32) * col_scale[None, :]).astype(bqkv.dtype)

    # Head grouping for the QKV projection column tiles (keeps the MXU full-width).
    g = _head_group(nh, hs)
    G = nh // g
    gw = g * hs

    # One-time, weight-sized relayouts (negligible vs. activation-sized HBM passes).
    w_r = wqkv_s.reshape(H, 3, G, g, hs).transpose(1, 2, 0, 3, 4).reshape(3, G, H, gw)
    b_r = bqkv_s.reshape(3, G, 1, gw)
    wo_r = wo.reshape(nh, hs, H)

    x2d = x.reshape(M, H)

    # 1) QKV projection, emitted head-major: no q/k/v transpose passes in XLA.
    qkv = _qkv_proj(x2d, w_r, b_r, nh=nh, hs=hs, g=g, out_dtype=x.dtype)   # (3, nh, M, hs)

    # 2) Causal flash attention.
    attn = _flash_attention(qkv, B=B, S=S, nh=nh, hs=hs)                   # (nh, M, hs)

    # 3) Output projection consuming the head-major layout directly (no transpose back).
    out = _out_proj(attn, wo_r, bo, out_dtype=x.dtype)                     # (M, H)

    # TODO(synk): dropout1 (attention probs) and dropout2 (output) omitted (eval mode).
    return out.reshape(B, S, H)


# ---------------------------------------------------------------------------
# Pure-JAX reference (matches the PyTorch module, dropout = identity)
# ---------------------------------------------------------------------------
def gpt_mha_reference(x, wqkv, bqkv, wo, bo, num_heads):
    B, S, H = x.shape
    hs = H // num_heads
    qkv = x @ wqkv + bqkv[0]
    q, k, v = qkv[..., :H], qkv[..., H:2 * H], qkv[..., 2 * H:]
    q = q.reshape(B, S, num_heads, hs).transpose(0, 2, 1, 3)
    k = k.reshape(B, S, num_heads, hs).transpose(0, 2, 1, 3)
    v = v.reshape(B, S, num_heads, hs).transpose(0, 2, 1, 3)
    scores = jnp.einsum("bhqd,bhkd->bhqk", q, k)
    mask = jnp.arange(S)[None, :] <= jnp.arange(S)[:, None]
    scores = jnp.where(mask, scores, -jnp.inf)
    probs = jax.nn.softmax(scores / jnp.sqrt(jnp.float32(hs)), axis=-1)
    attn = jnp.einsum("bhqk,bhkd->bqhd", probs, v).reshape(B, S, H)
    return attn @ wo + bo[0]


if __name__ == "__main__":
    def run_case(B, S, H, nh, dtype, seed, rtol, atol):
        key = jax.random.PRNGKey(seed)
        k1, k2, k3, k4, k5 = jax.random.split(key, 5)
        bound = 1.0 / float(np.sqrt(H))
        x = jax.random.normal(k1, (B, S, H), dtype=dtype)
        # stored transposed relative to nn.Linear.weight: (in, out)
        wqkv = jax.random.uniform(k2, (H, 3 * H), dtype, -bound, bound)
        bqkv = jax.random.uniform(k3, (1, 3 * H), dtype, -bound, bound)
        wo = jax.random.uniform(k4, (H, H), dtype, -bound, bound)
        bo = jax.random.uniform(k5, (1, H), dtype, -bound, bound)

        out = jax.block_until_ready(gpt_mha_pallas(x, wqkv, bqkv, wo, bo, nh))
        with jax.default_matmul_precision("highest"):
            ref = jax.block_until_ready(gpt_mha_reference(x, wqkv, bqkv, wo, bo, nh))
        np.testing.assert_allclose(np.asarray(out, np.float32), np.asarray(ref, np.float32),
                                   rtol=rtol, atol=atol)

    # Small canonical test (module-implied shapes): batch=2, seq=8, hidden=32, 4 heads.
    run_case(B=2, S=8, H=32, nh=4, dtype=jnp.float32, seed=0, rtol=1e-4, atol=1e-4)
    # Representative multi-tile test: exercises the large flash tiles, the clamped
    # kv-block DMA skip, and the below-/on-diagonal mask split.
    run_case(B=1, S=2048, H=128, nh=2, dtype=jnp.float32, seed=1, rtol=2e-3, atol=2e-3)

    print("KERNEL_OK")
</pallas_src>

<mosaic_0001>
module attributes {stable_mosaic.version = 11 : i64} {
  func.func @_qkv_proj_kernel(%arg0: i32, %arg1: i32, %arg2: i32, %arg3: memref<16x32xf32, #tpu.memory_space<vmem>>, %arg4: memref<1x1x32x32xf32, #tpu.memory_space<vmem>>, %arg5: memref<1x1x1x32xf32, #tpu.memory_space<vmem>>, %arg6: memref<1x4x16x8xf32, #tpu.memory_space<vmem>>) attributes {dimension_semantics = [#tpu.dimension_semantics<parallel>, #tpu.dimension_semantics<parallel>, #tpu.dimension_semantics<parallel>], iteration_bounds = array<i64: 1, 3, 1>, scalar_prefetch = 0 : i64, scratch_operands = 0 : i64, tpu.core_type = #tpu.core_type<tc>, window_params = [{transform_indices = @transform_0, window_bounds = array<i64: 16, 32>}, {transform_indices = @transform_1, window_bounds = array<i64: 1, 1, 32, 32>}, {transform_indices = @transform_2, window_bounds = array<i64: 1, 1, 1, 32>}, {transform_indices = @transform_3, window_bounds = array<i64: 1, 4, 16, 8>}]} {
    %c0 = arith.constant 0 : index
    %c0_0 = arith.constant 0 : index
    %0 = vector.load %arg3[%c0, %c0_0] : memref<16x32xf32, #tpu.memory_space<vmem>>, vector<16x32xf32>
    %c0_1 = arith.constant 0 : index
    %c0_2 = arith.constant 0 : index
    %c0_3 = arith.constant 0 : index
    %c0_4 = arith.constant 0 : index
    %1 = vector.load %arg4[%c0_1, %c0_2, %c0_3, %c0_4] : memref<1x1x32x32xf32, #tpu.memory_space<vmem>>, vector<1x1x32x32xf32>
    %2 = vector.shape_cast %1 : vector<1x1x32x32xf32> to vector<32x32xf32>
    %cst = arith.constant dense<0.000000e+00> : vector<16x32xf32>
    %3 = tpu.matmul %0, %2, %cst {dimension_numbers = #tpu.dot_dimension_numbers<[1], [0], [0], [1], [0, 0, 1, 1], [], []>} : vector<16x32xf32>, vector<32x32xf32>, vector<16x32xf32> -> vector<16x32xf32>
    %c0_5 = arith.constant 0 : index
    %c0_6 = arith.constant 0 : index
    %c0_7 = arith.constant 0 : index
    %c0_8 = arith.constant 0 : index
    %4 = vector.load %arg5[%c0_5, %c0_6, %c0_7, %c0_8] : memref<1x1x1x32xf32, #tpu.memory_space<vmem>>, vector<1x1x1x32xf32>
    %5 = vector.shape_cast %4 : vector<1x1x1x32xf32> to vector<1x32xf32>
    %6 = vector.broadcast %5 : vector<1x32xf32> to vector<16x32xf32>
    %7 = arith.addf %3, %6 : vector<16x32xf32>
    %8 = vector.extract_strided_slice %7 {offsets = [0, 0], sizes = [16, 8], strides = [1, 1]} : vector<16x32xf32> to vector<16x8xf32>
    %c0_9 = arith.constant 0 : index
    %c0_10 = arith.constant 0 : index
    %c0_11 = arith.constant 0 : index
    %c0_12 = arith.constant 0 : index
    %9 = vector.load %arg6[%c0_9, %c0_10, %c0_11, %c0_12] : memref<1x4x16x8xf32, #tpu.memory_space<vmem>>, vector<1x1x16x8xf32>
    %10 = vector.shape_cast %9 : vector<1x1x16x8xf32> to vector<16x8xf32>
    %11 = vector.shape_cast %8 : vector<16x8xf32> to vector<1x1x16x8xf32>
    tpu.vector_store %arg6[%c0_9, %c0_10, %c0_11, %c0_12], %11 {strides = array<i32>} : memref<1x4x16x8xf32, #tpu.memory_space<vmem>>, vector<1x1x16x8xf32>,
    %12 = vector.extract_strided_slice %7 {offsets = [0, 8], sizes = [16, 8], strides = [1, 1]} : vector<16x32xf32> to vector<16x8xf32>
    %c0_13 = arith.constant 0 : index
    %c1 = arith.constant 1 : index
    %c0_14 = arith.constant 0 : index
    %c0_15 = arith.constant 0 : index
    %13 = vector.load %arg6[%c0_13, %c1, %c0_14, %c0_15] : memref<1x4x16x8xf32, #tpu.memory_space<vmem>>, vector<1x1x16x8xf32>
    %14 = vector.shape_cast %13 : vector<1x1x16x8xf32> to vector<16x8xf32>
    %15 = vector.shape_cast %12 : vector<16x8xf32> to vector<1x1x16x8xf32>
    tpu.vector_store %arg6[%c0_13, %c1, %c0_14, %c0_15], %15 {strides = array<i32>} : memref<1x4x16x8xf32, #tpu.memory_space<vmem>>, vector<1x1x16x8xf32>,
    %16 = vector.extract_strided_slice %7 {offsets = [0, 16], sizes = [16, 8], strides = [1, 1]} : vector<16x32xf32> to vector<16x8xf32>
    %c0_16 = arith.constant 0 : index
    %c2 = arith.constant 2 : index
    %c0_17 = arith.constant 0 : index
    %c0_18 = arith.constant 0 : index
    %17 = vector.load %arg6[%c0_16, %c2, %c0_17, %c0_18] : memref<1x4x16x8xf32, #tpu.memory_space<vmem>>, vector<1x1x16x8xf32>
    %18 = vector.shape_cast %17 : vector<1x1x16x8xf32> to vector<16x8xf32>
    %19 = vector.shape_cast %16 : vector<16x8xf32> to vector<1x1x16x8xf32>
    tpu.vector_store %arg6[%c0_16, %c2, %c0_17, %c0_18], %19 {strides = array<i32>} : memref<1x4x16x8xf32, #tpu.memory_space<vmem>>, vector<1x1x16x8xf32>,
    %20 = vector.extract_strided_slice %7 {offsets = [0, 24], sizes = [16, 8], strides = [1, 1]} : vector<16x32xf32> to vector<16x8xf32>
    %c0_19 = arith.constant 0 : index
    %c3 = arith.constant 3 : index
    %c0_20 = arith.constant 0 : index
    %c0_21 = arith.constant 0 : index
    %21 = vector.load %arg6[%c0_19, %c3, %c0_20, %c0_21] : memref<1x4x16x8xf32, #tpu.memory_space<vmem>>, vector<1x1x16x8xf32>
    %22 = vector.shape_cast %21 : vector<1x1x16x8xf32> to vector<16x8xf32>
    %23 = vector.shape_cast %20 : vector<16x8xf32> to vector<1x1x16x8xf32>
    tpu.vector_store %arg6[%c0_19, %c3, %c0_20, %c0_21], %23 {strides = array<i32>} : memref<1x4x16x8xf32, #tpu.memory_space<vmem>>, vector<1x1x16x8xf32>,
    return
  }
  func.func @transform_0(%arg0: i32, %arg1: i32, %arg2: i32) -> (i32, i32) {
    %c0_i32 = arith.constant 0 : i32
    %c0_i32_0 = arith.constant 0 : i32
    return %arg0, %c0_i32 : i32, i32
  }
  func.func @transform_1(%arg0: i32, %arg1: i32, %arg2: i32) -> (i32, i32, i32, i32) {
    %c0_i32 = arith.constant 0 : i32
    %c0_i32_0 = arith.constant 0 : i32
    %c0_i32_1 = arith.constant 0 : i32
    return %arg1, %arg2, %c0_i32, %c0_i32_0 : i32, i32, i32, i32
  }
  func.func @transform_2(%arg0: i32, %arg1: i32, %arg2: i32) -> (i32, i32, i32, i32) {
    %c0_i32 = arith.constant 0 : i32
    %c0_i32_0 = arith.constant 0 : i32
    %c0_i32_1 = arith.constant 0 : i32
    return %arg1, %arg2, %c0_i32, %c0_i32_0 : i32, i32, i32, i32
  }
  func.func @transform_3(%arg0: i32, %arg1: i32, %arg2: i32) -> (i32, i32, i32, i32) {
    %c0_i32 = arith.constant 0 : i32
    %c0_i32_0 = arith.constant 0 : i32
    return %arg1, %arg2, %arg0, %c0_i32 : i32, i32, i32, i32
  }
}

</mosaic_0001>

<llo_original>
// kernel: tpu_custom_call.1
$region0: #{tpu_custom_call.1}
  #allocation0 [shape = 'u32[]', space=smem, size = 0x4, offset = 0x4, fixed_abs, tag = 'smem constant byte address 0x4 - core index']
  #allocation1 [shape = 'u32[72,128]{1,0:T(1,128)}', space=vmem, size = 0x9000, scoped, tag = 'internal scratch']
  %s0 = inlined_call_operand.hbm [shape: f32[16,32], index: 0, kind: input, shape index: {}]
  %s1 = inlined_call_operand.hbm [shape: f32[3,1,32,32], index: 1, kind: input, shape index: {}]
  %s2 = inlined_call_operand.hbm [shape: f32[3,1,1,32], index: 2, kind: input, shape index: {}]
  %s3 = inlined_call_operand.vmem [shape: f32[3,4,16,8], index: 3, kind: output, shape index: {}]
  %s4 = sld [smem:[#allocation0]]
  $region57: #{tpu_custom_call.1} parent=0
    _
  %s6 = ssub.s32 1, %s4
  %s7 = scalar_select 0, %s6, %s4
  $region1: #{tpu_custom_call.1} parent=0
    #allocation2 [shape = 'u8[8192]{0}', space=vmem, size = 0x2000, scoped, tag = 'input window, operand 0, single buffered']
    #allocation3 [shape = 's32[2]{0}', space=sflag, size = 0x8, scoped, tag = 'scoped memory for tpu_custom_call.1']
    #allocation4 [shape = 'u8[32768]{0}', space=vmem, size = 0x8000, scoped, tag = 'input window, operand 1']
    #allocation5 [shape = 's32[2]{0}', space=sflag, size = 0x8, scoped, tag = 'scoped memory for tpu_custom_call.1']
    #allocation6 [shape = 'u8[1024]{0}', space=vmem, size = 0x400, scoped, tag = 'input window, operand 2']
    %8 = vsyncpa [#allocation3], 0
    %9 = vsyncpa [#allocation5], 0
    %s10 = scalar_lea.sflag [#allocation5], 1
    %11 = vsyncpa %s10, 0
    loop: start=0, step=1, limit=5
    $region2: #{tpu_custom_call.1} parent=1 // loop_pre_header
      _
    $region3: #{tpu_custom_call.1} parent=1 // loop_header
      %s13 = sphi 0, %s17
      %p14 = scmp.ge.s32.totalorder %s13, 5
      %s20 = sphi 0, %s39
      %s21 = sphi 0, %s35
      %s22 = sphi 0, %s31
      %s23 = sphi 0, %s20
      %s24 = sphi 0, %s21
      %s25 = sphi 0, %s22
      %s26 = sphi 0, %s23
      %s27 = sphi 0, %s24
      %s28 = sphi 0, %s25
      %s42 = sphi 0, %s44
      %s45 = sphi 0, %s42
      %s46 = sphi 0, %s45
      %s62 = sphi 0, %s46
      %s70 = sphi 0, %s72
      %s73 = sphi 0, %s70
      %s74 = sphi 0, %s73
      %s90 = sphi 0, %s74
      %s98 = sphi 0, %s100
      %s101 = sphi 0, %s98
      %s102 = sphi 0, %s101
      %s118 = sphi 0, %s102
      %s128 = sphi 0, %s130
      %s131 = sphi 0, %s128
      %s132 = sphi 0, %s131
      %s148 = sphi 0, %s132
    $region4: #{tpu_custom_call.1} parent=1 // loop_header_branch
      %16 = sbr.rel (%p14) target = $region8
    $region5: #{tpu_custom_call.1} parent=1 // loop_body
      %s18 = ssub.s32 %s13, 1
      %s19 = ssub.s32 %s13, 2
      %s29 = sadd.s32 1, %s22
      %p30 = scmp.ge.s32.totalorder %s29, 1
      %s31 = scalar_select %p30, 0, %s29
      %s32 = sadd.s32 1, %s21
      %s33 = scalar_select %p30, %s32, %s21
      %p34 = scmp.ge.s32.totalorder %s33, 3
      %s35 = scalar_select %p34, 0, %s33
      %s36 = sadd.s32 1, %s20
      %s37 = scalar_select %p34, %s36, %s20
      %p38 = scmp.ge.s32.totalorder %s37, 1
      %s39 = scalar_select %p38, 0, %s37
      %s40 = ssub.s32 %s20, %s39
      %p41 = scmp.eq.s32.totalorder %s40, 0
      %s43 = sadd.s32 %s42, 1
      %s44 = scalar_select %p41, %s42, %s43
      %p47 = pneg %p41
      %p48 = scmp.eq.s32.totalorder %s13, 2
      %p49 = por %p47, %p48
      %p50 = scmp.ne.s32.totalorder %s42, %s45
      %p51 = scmp.eq.s32.totalorder %s13, 0
      %p52 = por %p50, %p51
      %p53 = scmp.ne.s32.totalorder %s42, %s45
      %p54 = scmp.eq.s32.totalorder %s18, 2
      %p55 = por %p53, %p54
      %p56 = scmp.ne.s32.totalorder %s45, %s46
      %p57 = scmp.eq.s32.totalorder %s18, 0
      %p58 = por %p56, %p57
      %p59 = scmp.ne.s32.totalorder %s45, %s46
      %p60 = scmp.eq.s32.totalorder %s19, 2
      %p61 = por %p59, %p60
      %p63 = scmp.ne.s32.totalorder %s46, %s62
      %p64 = scmp.eq.s32.totalorder %s19, 0
      %p65 = por %p63, %p64
      %s66 = ssub.s32 %s21, %s35
      %s67 = ssub.s32 %s22, %s31
      %s68 = sor.u32 %s66, %s67
      %p69 = scmp.eq.s32.totalorder %s68, 0
      %s71 = sadd.s32 %s70, 1
      %s72 = scalar_select %p69, %s70, %s71
      %p75 = pneg %p69
      %p76 = scmp.eq.s32.totalorder %s13, 2
      %p77 = por %p75, %p76
      %p78 = scmp.ne.s32.totalorder %s70, %s73
      %p79 = scmp.eq.s32.totalorder %s13, 0
      %p80 = por %p78, %p79
      %p81 = scmp.ne.s32.totalorder %s70, %s73
      %p82 = scmp.eq.s32.totalorder %s18, 2
      %p83 = por %p81, %p82
      %p84 = scmp.ne.s32.totalorder %s73, %s74
      %p85 = scmp.eq.s32.totalorder %s18, 0
      %p86 = por %p84, %p85
      %p87 = scmp.ne.s32.totalorder %s73, %s74
      %p88 = scmp.eq.s32.totalorder %s19, 2
      %p89 = por %p87, %p88
      %p91 = scmp.ne.s32.totalorder %s74, %s90
      %p92 = scmp.eq.s32.totalorder %s19, 0
      %p93 = por %p91, %p92
      %s94 = ssub.s32 %s21, %s35
      %s95 = ssub.s32 %s22, %s31
      %s96 = sor.u32 %s94, %s95
      %p97 = scmp.eq.s32.totalorder %s96, 0
      %s99 = sadd.s32 %s98, 1
      %s100 = scalar_select %p97, %s98, %s99
      %p103 = pneg %p97
      %p104 = scmp.eq.s32.totalorder %s13, 2
      %p105 = por %p103, %p104
      %p106 = scmp.ne.s32.totalorder %s98, %s101
      %p107 = scmp.eq.s32.totalorder %s13, 0
      %p108 = por %p106, %p107
      %p109 = scmp.ne.s32.totalorder %s98, %s101
      %p110 = scmp.eq.s32.totalorder %s18, 2
      %p111 = por %p109, %p110
      %p112 = scmp.ne.s32.totalorder %s101, %s102
      %p113 = scmp.eq.s32.totalorder %s18, 0
      %p114 = por %p112, %p113
      %p115 = scmp.ne.s32.totalorder %s101, %s102
      %p116 = scmp.eq.s32.totalorder %s19, 2
      %p117 = por %p115, %p116
      %p119 = scmp.ne.s32.totalorder %s102, %s118
      %p120 = scmp.eq.s32.totalorder %s19, 0
      %p121 = por %p119, %p120
      %s122 = ssub.s32 %s21, %s35
      %s123 = ssub.s32 %s22, %s31
      %s124 = sor.u32 %s122, %s123
      %s125 = ssub.s32 %s20, %s39
      %s126 = sor.u32 %s124, %s125
      %p127 = scmp.eq.s32.totalorder %s126, 0
      %s129 = sadd.s32 %s128, 1
      %s130 = scalar_select %p127, %s128, %s129
      %p133 = pneg %p127
      %p134 = scmp.eq.s32.totalorder %s13, 2
      %p135 = por %p133, %p134
      %p136 = scmp.ne.s32.totalorder %s128, %s131
      %p137 = scmp.eq.s32.totalorder %s13, 0
      %p138 = por %p136, %p137
      %p139 = scmp.ne.s32.totalorder %s128, %s131
      %p140 = scmp.eq.s32.totalorder %s18, 2
      %p141 = por %p139, %p140
      %p142 = scmp.ne.s32.totalorder %s131, %s132
      %p143 = scmp.eq.s32.totalorder %s18, 0
      %p144 = por %p142, %p143
      %p145 = scmp.ne.s32.totalorder %s131, %s132
      %p146 = scmp.eq.s32.totalorder %s19, 2
      %p147 = por %p145, %p146
      %p149 = scmp.ne.s32.totalorder %s132, %s148
      %p150 = scmp.eq.s32.totalorder %s19, 0
      %p151 = por %p149, %p150
      %p152 = scmp.le.s32.totalorder 1, %s13
      %p153 = scmp.lt.s32.totalorder %s13, 4
      %p154 = pnand %p152, %p153
      %p155 = pneg %p154
      // Predicated region
      $region9: #{tpu_custom_call.1} parent=5 // pred_check
        _
      $region10: #{tpu_custom_call.1} parent=5 // pred_check_branch
        %157 = sbr.rel (%p154) target = $region12
      $region11: #{tpu_custom_call.1} parent=5 // pred_region
        %s158 = ssub.s32 %s13, 1
        // Predicated region
        $region13: #{tpu_custom_call.1} parent=11 // pred_check
          %p159 = pneg %p58
        $region14: #{tpu_custom_call.1} parent=11 // pred_check_branch
          %161 = sbr.rel (%p159) target = $region16
        $region15: #{tpu_custom_call.1} parent=11 // pred_region
          %s162 = smul.u32 2, %s23
          %164 = vsyncadd [#allocation3], 0
          %s165 = smul.addr %s162, 8
          %s166 = scalar_lea.hbm %s0, %s165
          %s167 = sshll.u32 %s166, 4
          %s168 = int_to_ptr.hbm [resolvable:$true] %s167
          %s169 = sshll.u32 [#allocation2], 4
          %s170 = int_to_ptr.vmem [resolvable:$true] %s169
          %175 = dma.hbm_to_vmem [thread:$0]  %s168, 256, %s170, [#allocation3], 128, 128, 8
        $region16: #{tpu_custom_call.1} parent=11 // pred_fallthru
          _
      $region12: #{tpu_custom_call.1} parent=5 // pred_fallthru
        _
      %p176 = scmp.lt.s32.totalorder %s13, 3
      // Predicated region
      $region17: #{tpu_custom_call.1} parent=5 // pred_check
        %p177 = pneg %p176
      $region18: #{tpu_custom_call.1} parent=5 // pred_check_branch
        %179 = sbr.rel (%p177) target = $region20
      $region19: #{tpu_custom_call.1} parent=5 // pred_region
        // Predicated region
        $region21: #{tpu_custom_call.1} parent=19 // pred_check
          %p180 = pneg %p80
        $region22: #{tpu_custom_call.1} parent=19 // pred_check_branch
          %182 = sbr.rel (%p180) target = $region24
        $region23: #{tpu_custom_call.1} parent=19 // pred_region
          %s183 = sand.u32 %s13, 1
          %s184 = scalar_lea.sflag [#allocation5], %s183
          %s185 = sand.u32 %s70, 1
          %s186 = smul.addr %s185, 32
          %s187 = scalar_lea.vmem [#allocation4], %s186
          %189 = vsyncadd %s184, 0
          %s190 = smul.addr %s22, 4
          %s191 = smul.addr %s21, 4
          %s192 = sadd.s32 %s190, %s191
          %s193 = smul.addr %s192, 8
          %s194 = scalar_lea.hbm %s1, %s193
          %s195 = sshll.u32 %s194, 4
          %s196 = int_to_ptr.hbm [resolvable:$true] %s195
          %s197 = sshll.u32 %s187, 4
          %s198 = int_to_ptr.vmem [resolvable:$true] %s197
          %203 = dma.hbm_to_vmem [thread:$0]  %s196, 512, %s198, %s184, 128, 128, 8
        $region24: #{tpu_custom_call.1} parent=19 // pred_fallthru
          _
        // Predicated region
        $region25: #{tpu_custom_call.1} parent=19 // pred_check
          %p204 = pneg %p108
        $region26: #{tpu_custom_call.1} parent=19 // pred_check_branch
          %206 = sbr.rel (%p204) target = $region28
        $region27: #{tpu_custom_call.1} parent=19 // pred_region
          %s207 = sand.u32 %s13, 1
          %s208 = scalar_lea.sflag [#allocation5], %s207
          %s209 = sand.u32 %s98, 1
          %s210 = scalar_lea.vmem [#allocation6], %s209
          %212 = vsyncadd %s208, 0
          %s213 = sadd.s32 %s22, %s21
          %s214 = scalar_lea.hbm %s2, %s213
          %s216 = sshll.u32 %s214, 4
          %s217 = int_to_ptr.hbm [resolvable:$true] %s216
          %s218 = sshll.u32 %s210, 4
          %s219 = int_to_ptr.vmem [resolvable:$true] %s218
          %221 = dma.hbm_to_vmem [thread:$0]  %s217, 16, %s219, %s208
        $region28: #{tpu_custom_call.1} parent=19 // pred_fallthru
          _
      $region20: #{tpu_custom_call.1} parent=5 // pred_fallthru
        _
      %p222 = scmp.le.s32.totalorder 1, %s13
      %p223 = scmp.lt.s32.totalorder %s13, 4
      %p224 = pnand %p222, %p223
      %p225 = pneg %p224
      // Predicated region
      $region29: #{tpu_custom_call.1} parent=5 // pred_check
        _
      $region30: #{tpu_custom_call.1} parent=5 // pred_check_branch
        %227 = sbr.rel (%p224) target = $region32
      $region31: #{tpu_custom_call.1} parent=5 // pred_region
        %s228 = ssub.s32 %s13, 1
        // Predicated region
        $region33: #{tpu_custom_call.1} parent=31 // pred_check
          %p229 = pneg %p58
        $region34: #{tpu_custom_call.1} parent=31 // pred_check_branch
          %231 = sbr.rel (%p229) target = $region36
        $region35: #{tpu_custom_call.1} parent=31 // pred_region
          %233 = dma.done [#allocation3], 256
        $region36: #{tpu_custom_call.1} parent=31 // pred_fallthru
          _
        %s234 = sand.u32 %s18, 1
        %s235 = scalar_lea.sflag [#allocation5], %s234
        %s236 = sand.u32 %s73, 1
        %s237 = smul.addr %s236, 32
        %s238 = scalar_lea.vmem [#allocation4], %s237
        // Predicated region
        $region37: #{tpu_custom_call.1} parent=31 // pred_check
          %p239 = pneg %p86
        $region38: #{tpu_custom_call.1} parent=31 // pred_check_branch
          %241 = sbr.rel (%p239) target = $region40
        $region39: #{tpu_custom_call.1} parent=31 // pred_region
          %243 = dma.done %s235, 512
        $region40: #{tpu_custom_call.1} parent=31 // pred_fallthru
          _
        %s244 = sand.u32 %s18, 1
        %s245 = scalar_lea.sflag [#allocation5], %s244
        %s246 = sand.u32 %s101, 1
        %s247 = scalar_lea.vmem [#allocation6], %s246
        // Predicated region
        $region41: #{tpu_custom_call.1} parent=31 // pred_check
          %p248 = pneg %p114
        $region42: #{tpu_custom_call.1} parent=31 // pred_check_branch
          %250 = sbr.rel (%p248) target = $region44
        $region43: #{tpu_custom_call.1} parent=31 // pred_region
          %252 = dma.done %s245, 16
        $region44: #{tpu_custom_call.1} parent=31 // pred_fallthru
          _
        %p253 = pneg %p58
        %p254 = pneg %p55
        %s255 = sand.u32 %s18, 1
        %s256 = scalar_lea.sflag [#allocation5], %s255
        %s257 = sand.u32 %s73, 1
        %s258 = smul.addr %s257, 32
        %s259 = scalar_lea.vmem [#allocation4], %s258
        %p260 = pneg %p86
        %p261 = pneg %p83
        %s262 = sand.u32 %s18, 1
        %s263 = scalar_lea.sflag [#allocation5], %s262
        %s264 = sand.u32 %s101, 1
        %s265 = scalar_lea.vmem [#allocation6], %s264
        %p266 = pneg %p114
        %p267 = pneg %p111
        %p268 = pneg %p144
        %p269 = pneg %p141
        %s270 = smul.u32 4, %s25
        %s271 = smul.u32 2, %s23
        %p272 = scmp.lt.s32.totalorder %s24, 2
        %s273 = scalar_select %p272, %s24, 2
        %p274 = scmp.lt.s32.totalorder %s270, 3
        %s275 = scalar_select %p274, %s270, 3
        %p276 = scmp.lt.s32.totalorder %s271, 1
        %s277 = scalar_select %p276, %s271, 1
        %s278 = smul.addr %s275, 2
        %s279 = sadd.s32 %s277, %s278
        %s280 = smul.addr %s273, 8
        %s281 = sadd.s32 %s279, %s280
        %s282 = smul.addr %s281, 8
        %s283 = scalar_lea.vmem %s3, %s282
        %s284 = smul.u32 2, %s23
        %s285 = smul.u32 4, %s25
        %s286 = smul.u32 2, %s23
        %p287 = scmp.lt.s32.totalorder %s24, 2
        %s288 = scalar_select %p287, %s24, 2
        %p289 = scmp.lt.s32.totalorder %s285, 3
        %s290 = scalar_select %p289, %s285, 3
        %p291 = scmp.lt.s32.totalorder %s286, 1
        %s292 = scalar_select %p291, %s286, 1
        %s293 = smul.addr %s290, 2
        %s294 = sadd.s32 %s292, %s293
        %s295 = smul.addr %s288, 8
        %s296 = sadd.s32 %s294, %s295
        %s297 = smul.addr %s296, 8
        %s298 = scalar_lea.vmem %s3, %s297
        %s299 = smul.u32 4, %s25
        %s300 = smul.u32 2, %s23
        %v301 = vld [vmem:[#allocation2] sm:$0xff]
        %v302 = vld [vmem:[#allocation2 + $0x8] sm:$0xff]
        %v303 = vld [vmem:[%s238] sm:$0xff]
        %v304 = vld [vmem:[%s238 + $0x8] sm:$0xff]
        %v305 = vld [vmem:[%s238 + $0x10] sm:$0xff]
        %v306 = vld [vmem:[%s238 + $0x18] sm:$0xff]
        %v307 = vld [vmem:[%s247] sm:$0x1]
        %v309 = vperm.slane %v307, 0
        %vm311 = vcmask 261120
        %v313 = vsel %vm311, %v301, 0
        %v316 = vsel %vm311, %v302, 0
        %318 = vmatpush.msra.mxu0 0.0
        %319 = vmatpush.msra.mxu0 0.0
        %320 = vmatpush.msra.mxu0 0.0
        %321 = vmatpush.msra.mxu0 0.0
        %322 = vmatpush.msra.mxu0 0.0
        %323 = vmatpush.msra.mxu0 0.0
        %324 = vmatpush.msra.mxu0 0.0
        %325 = vmatpush.msra.mxu0 0.0
        %326 = vmatpush.msra.mxu0 0.0
        %327 = vmatpush.msra.mxu0 0.0
        %328 = vmatpush.msra.mxu0 0.0
        %329 = vmatpush.msra.mxu0 0.0
        %330 = vmatpush.msra.mxu0 %v306
        %331 = vmatpush.msra.mxu0 %v305
        %332 = vmatpush.msra.mxu0 %v304
        %333 = vmatpush.msra.mxu0 %v303
        %334 = vmatmul.f32.gmra.mxu0 %v313
        %v335 = vpop.f32.mrf.mxu0
        %v336 = vadd.f32 %v309, %v335
        %337 = vmatmul.f32.gmra.mxu0 %v316
        %v338 = vpop.f32.mrf.mxu0
        %v339 = vadd.f32 %v309, %v338
        %340 = vdwg.mxu0
        %vm341 = vcmask 64512
        %342 = vst.msk [vmem:[%s298] sm:$0xff] %vm341, %v336
        %343 = vst.msk [vmem:[%s298 + $0x8] sm:$0xff] %vm341, %v339
        %346 = vrot.lane.b32.xlu0 %v336, 120
        %v347 = vpop.permute.xlu0 %346
        %348 = vrot.lane.b32.xlu0 %v339, 120
        %v349 = vpop.permute.xlu0 %348
        %s352 = scalar_lea.vmem %s298, 16
        %353 = vst.msk [vmem:[%s352] sm:$0xff] %vm341, %v347
        %354 = vst.msk [vmem:[%s352 + $0x8] sm:$0xff] %vm341, %v349
        %355 = vrot.lane.b32.xlu0 %v336, 112
        %v356 = vpop.permute.xlu0 %355
        %357 = vrot.lane.b32.xlu0 %v339, 112
        %v358 = vpop.permute.xlu0 %357
        %s361 = scalar_lea.vmem %s298, 32
        %362 = vst.msk [vmem:[%s361] sm:$0xff] %vm341, %v356
        %363 = vst.msk [vmem:[%s361 + $0x8] sm:$0xff] %vm341, %v358
        %364 = vrot.lane.b32.xlu0 %v336, 104
        %v365 = vpop.permute.xlu0 %364
        %366 = vrot.lane.b32.xlu0 %v339, 104
        %v367 = vpop.permute.xlu0 %366
        %s370 = scalar_lea.vmem %s298, 48
        %371 = vst.msk [vmem:[%s370] sm:$0xff] %vm341, %v365
        %372 = vst.msk [vmem:[%s370 + $0x8] sm:$0xff] %vm341, %v367
        %s373 = smul.u32 4, %s25
        %s374 = smul.u32 2, %s23
        %p375 = scmp.lt.s32.totalorder %s24, 2
        %s376 = scalar_select %p375, %s24, 2
        %p377 = scmp.lt.s32.totalorder %s373, 3
        %s378 = scalar_select %p377, %s373, 3
        %p379 = scmp.lt.s32.totalorder %s374, 1
        %s380 = scalar_select %p379, %s374, 1
        %s381 = smul.addr %s378, 2
        %s382 = sadd.s32 %s380, %s381
        %s383 = smul.addr %s376, 8
        %s384 = sadd.s32 %s382, %s383
        %s385 = smul.addr %s384, 8
        %s386 = scalar_lea.vmem %s3, %s385
        // Predicated region
        $region45: #{tpu_custom_call.1} parent=31 // pred_check
          %p387 = pneg %p141
        $region46: #{tpu_custom_call.1} parent=31 // pred_check_branch
          %389 = sbr.rel (%p387) target = $region48
        $region47: #{tpu_custom_call.1} parent=31 // pred_region
          %s390 = smul.u32 4, %s25
          %s391 = smul.u32 2, %s23
        $region48: #{tpu_custom_call.1} parent=31 // pred_fallthru
          _
      $region32: #{tpu_custom_call.1} parent=5 // pred_fallthru
        _
      %p392 = scmp.le.s32.totalorder 2, %s13
      // Predicated region
      $region49: #{tpu_custom_call.1} parent=5 // pred_check
        %p393 = pneg %p392
      $region50: #{tpu_custom_call.1} parent=5 // pred_check_branch
        %395 = sbr.rel (%p393) target = $region52
      $region51: #{tpu_custom_call.1} parent=5 // pred_region
        %s396 = ssub.s32 %s13, 2
        // Predicated region
        $region53: #{tpu_custom_call.1} parent=51 // pred_check
          %p397 = pneg %p147
        $region54: #{tpu_custom_call.1} parent=51 // pred_check_branch
          %399 = sbr.rel (%p397) target = $region56
        $region55: #{tpu_custom_call.1} parent=51 // pred_region
          %s400 = smul.u32 4, %s28
          %s401 = smul.u32 2, %s26
          %p402 = scmp.lt.s32.totalorder %s27, 2
          %s403 = scalar_select %p402, %s27, 2
          %p404 = scmp.lt.s32.totalorder %s400, 3
          %s405 = scalar_select %p404, %s400, 3
          %p406 = scmp.lt.s32.totalorder %s401, 1
          %s407 = scalar_select %p406, %s401, 1
          %s408 = smul.addr %s405, 2
          %s409 = sadd.s32 %s407, %s408
          %s410 = smul.addr %s403, 8
          %s411 = sadd.s32 %s409, %s410
          %s412 = smul.addr %s411, 8
          %s413 = scalar_lea.vmem %s3, %s412
        $region56: #{tpu_custom_call.1} parent=51 // pred_fallthru
          _
      $region52: #{tpu_custom_call.1} parent=5 // pred_fallthru
        _
    $region6: #{tpu_custom_call.1} parent=1 // loop_footer
      %s17 = sadd.s32 1, %s13
    $region7: #{tpu_custom_call.1} parent=1 // loop_footer_branch
      %12 = sbr.rel target = $region3
    $region8: #{tpu_custom_call.1} parent=1 // loop_exit
      _
    %414 = vsyncpa [#allocation3], 1
    %s415 = scalar_lea.sflag [#allocation3], 1
    %416 = vsyncpa %s415, 1
    %417 = vsyncpa [#allocation5], 1
    %s418 = scalar_lea.sflag [#allocation5], 1
    %419 = vsyncpa %s418, 1

</llo_original>
